<compile_context>
chip_gen: v5e
topology: v5e:2x2
jax: 0.10.0
libtpu: 0.0.40
codegen_flags: <defaults>
</compile_context>

<pallas_src>
import functools

import jax
import jax.numpy as jnp
from jax.experimental import pallas as pl
from jax.experimental.pallas import tpu as pltpu


def _round_up(n, m):
    return ((n + m - 1) // m) * m


def _ffn_kernel(x_ref, w1_ref, b1_ref, w2_ref, b2_ref, g_ref, beta_ref, o_ref,
                *, d_valid):
    """One (tile_m, d_in_p) block of tokens; weights fully resident in VMEM."""
    x = x_ref[...]                                    # (TM, d_in_p) f32

    # ---- w_1 + ReLU : bf16 MXU matmul, f32 accumulate ----
    h = jnp.dot(x.astype(jnp.bfloat16), w1_ref[...],
                preferred_element_type=jnp.float32) + b1_ref[...]
    h = jnp.maximum(h, 0.0)

    # ---- w_2 : bf16 MXU matmul, f32 accumulate ----
    y = jnp.dot(h.astype(jnp.bfloat16), w2_ref[...],
                preferred_element_type=jnp.float32) + b2_ref[...]

    # ---- dropout (eval: identity) + residual, f32 ----
    y = y + x

    # ---- LayerNorm over the TRUE feature dim (eps=1e-6, biased variance) ----
    d_pad = y.shape[-1]
    if d_valid == d_pad:
        mean = jnp.mean(y, axis=-1, keepdims=True)
        cent = y - mean
        var = jnp.mean(cent * cent, axis=-1, keepdims=True)
    else:
        lane = jax.lax.broadcasted_iota(jnp.int32, (1, d_pad), 1)
        mask = lane < d_valid
        y = jnp.where(mask, y, 0.0)
        inv_d = 1.0 / d_valid
        mean = jnp.sum(y, axis=-1, keepdims=True) * inv_d
        cent = jnp.where(mask, y - mean, 0.0)
        var = jnp.sum(cent * cent, axis=-1, keepdims=True) * inv_d

    y_norm = cent * jax.lax.rsqrt(var + 1e-6)         # rsqrt -> EUP slot
    o_ref[...] = (y_norm * g_ref[...] + beta_ref[...]).astype(o_ref.dtype)


def positionwise_ffn(x, w1, b1, w2, b2, gamma, beta, *,
                     tile_m=256, vmem_limit_bytes=48 * 1024 * 1024):
    """x: (B, S, d_in) float32.  Returns (B, S, d_in)."""
    B, S, d_in = x.shape
    d_hid = w1.shape[1]
    N = B * S

    # Lane-dense feature padding (multiples of 128) + large token tiles.
    d_in_p = _round_up(d_in, 128)
    d_hid_p = _round_up(d_hid, 128)
    tm = max(8, min(tile_m, _round_up(N, 8)))
    n_p = _round_up(N, tm)
    grid = (n_p // tm,)

    f32, bf16 = jnp.float32, jnp.bfloat16
    x2 = jnp.zeros((n_p, d_in_p), x.dtype).at[:N, :d_in].set(x.reshape(N, d_in))
    w1_p = jnp.zeros((d_in_p, d_hid_p), bf16).at[:d_in, :d_hid].set(w1.astype(bf16))
    b1_p = jnp.zeros((1, d_hid_p), f32).at[0, :d_hid].set(b1.astype(f32))
    w2_p = jnp.zeros((d_hid_p, d_in_p), bf16).at[:d_hid, :d_in].set(w2.astype(bf16))
    b2_p = jnp.zeros((1, d_in_p), f32).at[0, :d_in].set(b2.astype(f32))
    g_p = jnp.zeros((1, d_in_p), f32).at[0, :d_in].set(gamma.astype(f32))
    bt_p = jnp.zeros((1, d_in_p), f32).at[0, :d_in].set(beta.astype(f32))

    kernel = functools.partial(_ffn_kernel, d_valid=d_in)

    cost = pl.CostEstimate(
        flops=4 * N * d_in * d_hid,
        transcendentals=N,                              # one rsqrt per token
        bytes_accessed=(n_p * d_in_p * 4 * 2            # x in + out (f32)
                        + d_in_p * d_hid_p * 2 * 2      # w1 + w2 (bf16)
                        + d_hid_p * 4 + 3 * d_in_p * 4))  # biases / LN params

    def build(single_buffer_params):
        if single_buffer_params:
            # Loop-invariant operands: skip double-buffering (saves VMEM).
            def cspec(shape):
                return pl.BlockSpec(shape, lambda i: (0, 0),
                                    pipeline_mode=pl.Buffered(1))
        else:
            def cspec(shape):
                return pl.BlockSpec(shape, lambda i: (0, 0))

        return pl.pallas_call(
            kernel,
            out_shape=jax.ShapeDtypeStruct((n_p, d_in_p), x.dtype),
            grid_spec=pltpu.PrefetchScalarGridSpec(
                num_scalar_prefetch=0,
                grid=grid,
                in_specs=[
                    pl.BlockSpec((tm, d_in_p), lambda i: (i, 0)),   # x tile
                    cspec((d_in_p, d_hid_p)),                       # w1 (full)
                    cspec((1, d_hid_p)),                            # b1
                    cspec((d_hid_p, d_in_p)),                       # w2 (full)
                    cspec((1, d_in_p)),                             # b2
                    cspec((1, d_in_p)),                             # ln gamma
                    cspec((1, d_in_p)),                             # ln beta
                ],
                out_specs=pl.BlockSpec((tm, d_in_p), lambda i: (i, 0)),
            ),
            compiler_params=pltpu.CompilerParams(
                dimension_semantics=("parallel",),
                vmem_limit_bytes=vmem_limit_bytes,
            ),
            cost_estimate=cost,
        )

    args = (x2, w1_p, b1_p, w2_p, b2_p, g_p, bt_p)
    try:
        out2 = jax.block_until_ready(build(True)(*args))
    except Exception:
        # pipeline_mode=pl.Buffered(1) unsupported in this JAX build:
        # fall back to default (double-buffered) parameter operands.
        out2 = jax.block_until_ready(build(False)(*args))

    return out2[:N, :d_in].reshape(B, S, d_in)


def _reference(x, w1, b1, w2, b2, gamma, beta, matmul_dtype=jnp.float32):
    """Pure-JAX reference of the PyTorch forward (eval-mode dropout)."""
    residual = x
    h = jnp.dot(x.astype(matmul_dtype), w1.astype(matmul_dtype),
                preferred_element_type=jnp.float32) + b1
    h = jnp.maximum(h, 0.0)
    y = jnp.dot(h.astype(matmul_dtype), w2.astype(matmul_dtype),
                preferred_element_type=jnp.float32) + b2
    y = y + residual
    mean = jnp.mean(y, axis=-1, keepdims=True)
    var = jnp.mean((y - mean) ** 2, axis=-1, keepdims=True)
    return (y - mean) / jnp.sqrt(var + 1e-6) * gamma + beta


if __name__ == "__main__":
    # Small shapes consistent with the module: tokens (B, S, d_in), d_hid hidden.
    B, S, d_in, d_hid = 2, 8, 32, 64

    key = jax.random.PRNGKey(0)
    kx, k1, kb1, k2, kb2 = jax.random.split(key, 5)

    x = jax.random.normal(kx, (B, S, d_in), dtype=jnp.float32)

    # Deterministic synthetic params (shapes match nn.Linear / nn.LayerNorm).
    bound1 = 1.0 / (d_in ** 0.5)
    bound2 = 1.0 / (d_hid ** 0.5)
    w1 = jax.random.uniform(k1, (d_in, d_hid), jnp.float32, -bound1, bound1)
    b1 = jax.random.uniform(kb1, (d_hid,), jnp.float32, -bound1, bound1)
    w2 = jax.random.uniform(k2, (d_hid, d_in), jnp.float32, -bound2, bound2)
    b2 = jax.random.uniform(kb2, (d_in,), jnp.float32, -bound2, bound2)
    gamma = jnp.ones((d_in,), jnp.float32)
    beta = jnp.zeros((d_in,), jnp.float32)

    out = jax.block_until_ready(positionwise_ffn(x, w1, b1, w2, b2, gamma, beta))
    assert out.shape == (B, S, d_in)

    # Tight check vs. a reference that mirrors the kernel's bf16 MXU feed.
    ref_bf16 = _reference(x, w1, b1, w2, b2, gamma, beta, matmul_dtype=jnp.bfloat16)
    assert jnp.allclose(out, ref_bf16, atol=5e-3, rtol=5e-3), "mismatch vs bf16-matmul reference"

    # Loose sanity check vs. the pure-f32 PyTorch-equivalent math.
    ref_f32 = _reference(x, w1, b1, w2, b2, gamma, beta, matmul_dtype=jnp.float32)
    assert jnp.allclose(out, ref_f32, atol=5e-2, rtol=5e-2), "mismatch vs f32 reference"

    # Ragged token count: exercises token-tile fringe padding + slicing.
    x_odd = jax.random.normal(kx, (2, 5, d_in), dtype=jnp.float32)
    out_odd = jax.block_until_ready(positionwise_ffn(x_odd, w1, b1, w2, b2, gamma, beta))
    ref_odd = _reference(x_odd, w1, b1, w2, b2, gamma, beta, matmul_dtype=jnp.bfloat16)
    assert out_odd.shape == (2, 5, d_in)
    assert jnp.allclose(out_odd, ref_odd, atol=5e-3, rtol=5e-3), "mismatch on ragged shape"

    print("KERNEL_OK")
</pallas_src>

<mosaic_0001>
module attributes {stable_mosaic.version = 11 : i64} {
  func.func @_ffn_kernel(%arg0: i32, %arg1: memref<16x128xf32, #tpu.memory_space<vmem>>, %arg2: memref<128x128xbf16, #tpu.memory_space<vmem>>, %arg3: memref<1x128xf32, #tpu.memory_space<vmem>>, %arg4: memref<128x128xbf16, #tpu.memory_space<vmem>>, %arg5: memref<1x128xf32, #tpu.memory_space<vmem>>, %arg6: memref<1x128xf32, #tpu.memory_space<vmem>>, %arg7: memref<1x128xf32, #tpu.memory_space<vmem>>, %arg8: memref<16x128xf32, #tpu.memory_space<vmem>>) attributes {dimension_semantics = [#tpu.dimension_semantics<parallel>], iteration_bounds = array<i64: 1>, scalar_prefetch = 0 : i64, scratch_operands = 0 : i64, tpu.core_type = #tpu.core_type<tc>, window_params = [{transform_indices = @transform_0, window_bounds = array<i64: 16, 128>}, {pipeline_mode = #tpu.pipeline_mode<synchronous>, transform_indices = @transform_1, window_bounds = array<i64: 128, 128>}, {pipeline_mode = #tpu.pipeline_mode<synchronous>, transform_indices = @transform_2, window_bounds = array<i64: 1, 128>}, {pipeline_mode = #tpu.pipeline_mode<synchronous>, transform_indices = @transform_3, window_bounds = array<i64: 128, 128>}, {pipeline_mode = #tpu.pipeline_mode<synchronous>, transform_indices = @transform_4, window_bounds = array<i64: 1, 128>}, {pipeline_mode = #tpu.pipeline_mode<synchronous>, transform_indices = @transform_5, window_bounds = array<i64: 1, 128>}, {pipeline_mode = #tpu.pipeline_mode<synchronous>, transform_indices = @transform_6, window_bounds = array<i64: 1, 128>}, {transform_indices = @transform_7, window_bounds = array<i64: 16, 128>}]} {
    %c0 = arith.constant 0 : index
    %c0_0 = arith.constant 0 : index
    %0 = vector.load %arg1[%c0, %c0_0] : memref<16x128xf32, #tpu.memory_space<vmem>>, vector<16x128xf32>
    %1 = arith.truncf %0 : vector<16x128xf32> to vector<16x128xbf16>
    %c0_1 = arith.constant 0 : index
    %c0_2 = arith.constant 0 : index
    %2 = vector.load %arg2[%c0_1, %c0_2] : memref<128x128xbf16, #tpu.memory_space<vmem>>, vector<128x128xbf16>
    %cst = arith.constant dense<0.000000e+00> : vector<16x128xf32>
    %3 = tpu.matmul %1, %2, %cst {dimension_numbers = #tpu.dot_dimension_numbers<[1], [0], [0], [1], [0, 0, 1, 1], [], []>} : vector<16x128xbf16>, vector<128x128xbf16>, vector<16x128xf32> -> vector<16x128xf32>
    %c0_3 = arith.constant 0 : index
    %c0_4 = arith.constant 0 : index
    %4 = vector.load %arg3[%c0_3, %c0_4] : memref<1x128xf32, #tpu.memory_space<vmem>>, vector<1x128xf32>
    %5 = vector.broadcast %4 : vector<1x128xf32> to vector<16x128xf32>
    %6 = arith.addf %3, %5 : vector<16x128xf32>
    %cst_5 = arith.constant 0.000000e+00 : f32
    %7 = vector.broadcast %cst_5 : f32 to vector<16x128xf32>
    %8 = arith.maximumf %6, %7 : vector<16x128xf32>
    %9 = arith.truncf %8 : vector<16x128xf32> to vector<16x128xbf16>
    %c0_6 = arith.constant 0 : index
    %c0_7 = arith.constant 0 : index
    %10 = vector.load %arg4[%c0_6, %c0_7] : memref<128x128xbf16, #tpu.memory_space<vmem>>, vector<128x128xbf16>
    %cst_8 = arith.constant dense<0.000000e+00> : vector<16x128xf32>
    %11 = tpu.matmul %9, %10, %cst_8 {dimension_numbers = #tpu.dot_dimension_numbers<[1], [0], [0], [1], [0, 0, 1, 1], [], []>} : vector<16x128xbf16>, vector<128x128xbf16>, vector<16x128xf32> -> vector<16x128xf32>
    %c0_9 = arith.constant 0 : index
    %c0_10 = arith.constant 0 : index
    %12 = vector.load %arg5[%c0_9, %c0_10] : memref<1x128xf32, #tpu.memory_space<vmem>>, vector<1x128xf32>
    %13 = vector.broadcast %12 : vector<1x128xf32> to vector<16x128xf32>
    %14 = arith.addf %11, %13 : vector<16x128xf32>
    %15 = arith.addf %14, %0 : vector<16x128xf32>
    %16 = tpu.iota {dimensions = array<i32: 1>} : vector<1x128xi32>
    %c32_i32 = arith.constant 32 : i32
    %17 = vector.broadcast %c32_i32 : i32 to vector<1x128xi32>
    %18 = arith.cmpi slt, %16, %17 : vector<1x128xi32>
    %cst_11 = arith.constant 0.000000e+00 : f32
    %19 = vector.shape_cast %18 : vector<1x128xi1> to vector<1x128xi1>
    %20 = vector.broadcast %19 : vector<1x128xi1> to vector<16x128xi1>
    %21 = vector.broadcast %cst_11 : f32 to vector<16x128xf32>
    %22 = arith.select %20, %15, %21 : vector<16x128xi1>, vector<16x128xf32>
    %cst_12 = arith.constant dense<0.000000e+00> : vector<16xf32>
    %23 = vector.multi_reduction <add>, %22, %cst_12 [1] : vector<16x128xf32> to vector<16xf32>
    %24 = vector.shape_cast %23 : vector<16xf32> to vector<16x1xf32>
    %cst_13 = arith.constant 3.125000e-02 : f32
    %25 = vector.broadcast %cst_13 : f32 to vector<16x1xf32>
    %26 = arith.mulf %24, %25 : vector<16x1xf32>
    %27 = vector.broadcast %26 : vector<16x1xf32> to vector<16x128xf32>
    %28 = arith.subf %22, %27 : vector<16x128xf32>
    %cst_14 = arith.constant 0.000000e+00 : f32
    %29 = vector.shape_cast %18 : vector<1x128xi1> to vector<1x128xi1>
    %30 = vector.broadcast %29 : vector<1x128xi1> to vector<16x128xi1>
    %31 = vector.broadcast %cst_14 : f32 to vector<16x128xf32>
    %32 = arith.select %30, %28, %31 : vector<16x128xi1>, vector<16x128xf32>
    %33 = arith.mulf %32, %32 : vector<16x128xf32>
    %cst_15 = arith.constant dense<0.000000e+00> : vector<16xf32>
    %34 = vector.multi_reduction <add>, %33, %cst_15 [1] : vector<16x128xf32> to vector<16xf32>
    %35 = vector.shape_cast %34 : vector<16xf32> to vector<16x1xf32>
    %cst_16 = arith.constant 3.125000e-02 : f32
    %36 = vector.broadcast %cst_16 : f32 to vector<16x1xf32>
    %37 = arith.mulf %35, %36 : vector<16x1xf32>
    %cst_17 = arith.constant 9.99999997E-7 : f32
    %38 = vector.broadcast %cst_17 : f32 to vector<16x1xf32>
    %39 = arith.addf %37, %38 : vector<16x1xf32>
    %40 = math.rsqrt %39 : vector<16x1xf32>
    %41 = vector.broadcast %40 : vector<16x1xf32> to vector<16x128xf32>
    %42 = arith.mulf %32, %41 : vector<16x128xf32>
    %c0_18 = arith.constant 0 : index
    %c0_19 = arith.constant 0 : index
    %43 = vector.load %arg6[%c0_18, %c0_19] : memref<1x128xf32, #tpu.memory_space<vmem>>, vector<1x128xf32>
    %44 = vector.broadcast %43 : vector<1x128xf32> to vector<16x128xf32>
    %45 = arith.mulf %42, %44 : vector<16x128xf32>
    %c0_20 = arith.constant 0 : index
    %c0_21 = arith.constant 0 : index
    %46 = vector.load %arg7[%c0_20, %c0_21] : memref<1x128xf32, #tpu.memory_space<vmem>>, vector<1x128xf32>
    %47 = vector.broadcast %46 : vector<1x128xf32> to vector<16x128xf32>
    %48 = arith.addf %45, %47 : vector<16x128xf32>
    %c0_22 = arith.constant 0 : index
    %c0_23 = arith.constant 0 : index
    %49 = vector.load %arg8[%c0_22, %c0_23] : memref<16x128xf32, #tpu.memory_space<vmem>>, vector<16x128xf32>
    tpu.vector_store %arg8[%c0_22, %c0_23], %48 {strides = array<i32>} : memref<16x128xf32, #tpu.memory_space<vmem>>, vector<16x128xf32>,
    return
  }
  func.func @transform_0(%arg0: i32) -> (i32, i32) {
    %c0_i32 = arith.constant 0 : i32
    %c0_i32_0 = arith.constant 0 : i32
    return %arg0, %c0_i32 : i32, i32
  }
  func.func @transform_1(%arg0: i32) -> (i32, i32) {
    %c0_i32 = arith.constant 0 : i32
    %c0_i32_0 = arith.constant 0 : i32
    %c0_i32_1 = arith.constant 0 : i32
    return %c0_i32, %c0_i32_0 : i32, i32
  }
  func.func @transform_2(%arg0: i32) -> (i32, i32) {
    %c0_i32 = arith.constant 0 : i32
    %c0_i32_0 = arith.constant 0 : i32
    %c0_i32_1 = arith.constant 0 : i32
    return %c0_i32, %c0_i32_0 : i32, i32
  }
  func.func @transform_3(%arg0: i32) -> (i32, i32) {
    %c0_i32 = arith.constant 0 : i32
    %c0_i32_0 = arith.constant 0 : i32
    %c0_i32_1 = arith.constant 0 : i32
    return %c0_i32, %c0_i32_0 : i32, i32
  }
  func.func @transform_4(%arg0: i32) -> (i32, i32) {
    %c0_i32 = arith.constant 0 : i32
    %c0_i32_0 = arith.constant 0 : i32
    %c0_i32_1 = arith.constant 0 : i32
    return %c0_i32, %c0_i32_0 : i32, i32
  }
  func.func @transform_5(%arg0: i32) -> (i32, i32) {
    %c0_i32 = arith.constant 0 : i32
    %c0_i32_0 = arith.constant 0 : i32
    %c0_i32_1 = arith.constant 0 : i32
    return %c0_i32, %c0_i32_0 : i32, i32
  }
  func.func @transform_6(%arg0: i32) -> (i32, i32) {
    %c0_i32 = arith.constant 0 : i32
    %c0_i32_0 = arith.constant 0 : i32
    %c0_i32_1 = arith.constant 0 : i32
    return %c0_i32, %c0_i32_0 : i32, i32
  }
  func.func @transform_7(%arg0: i32) -> (i32, i32) {
    %c0_i32 = arith.constant 0 : i32
    %c0_i32_0 = arith.constant 0 : i32
    return %arg0, %c0_i32 : i32, i32
  }
}

module attributes {stable_mosaic.version = 11 : i64} {
  func.func @_ffn_kernel(%arg0: i32, %arg1: memref<16x128xf32, #tpu.memory_space<vmem>>, %arg2: memref<128x128xbf16, #tpu.memory_space<vmem>>, %arg3: memref<1x128xf32, #tpu.memory_space<vmem>>, %arg4: memref<128x128xbf16, #tpu.memory_space<vmem>>, %arg5: memref<1x128xf32, #tpu.memory_space<vmem>>, %arg6: memref<1x128xf32, #tpu.memory_space<vmem>>, %arg7: memref<1x128xf32, #tpu.memory_space<vmem>>, %arg8: memref<16x128xf32, #tpu.memory_space<vmem>>) attributes {dimension_semantics = [#tpu.dimension_semantics<parallel>], iteration_bounds = array<i64: 1>, scalar_prefetch = 0 : i64, scratch_operands = 0 : i64, tpu.core_type = #tpu.core_type<tc>, window_params = [{transform_indices = @transform_0, window_bounds = array<i64: 16, 128>}, {pipeline_mode = #tpu.pipeline_mode<synchronous>, transform_indices = @transform_1, window_bounds = array<i64: 128, 128>}, {pipeline_mode = #tpu.pipeline_mode<synchronous>, transform_indices = @transform_2, window_bounds = array<i64: 1, 128>}, {pipeline_mode = #tpu.pipeline_mode<synchronous>, transform_indices = @transform_3, window_bounds = array<i64: 128, 128>}, {pipeline_mode = #tpu.pipeline_mode<synchronous>, transform_indices = @transform_4, window_bounds = array<i64: 1, 128>}, {pipeline_mode = #tpu.pipeline_mode<synchronous>, transform_indices = @transform_5, window_bounds = array<i64: 1, 128>}, {pipeline_mode = #tpu.pipeline_mode<synchronous>, transform_indices = @transform_6, window_bounds = array<i64: 1, 128>}, {transform_indices = @transform_7, window_bounds = array<i64: 16, 128>}]} {
    %c0 = arith.constant 0 : index
    %c0_0 = arith.constant 0 : index
    %0 = vector.load %arg1[%c0, %c0_0] : memref<16x128xf32, #tpu.memory_space<vmem>>, vector<16x128xf32>
    %1 = arith.truncf %0 : vector<16x128xf32> to vector<16x128xbf16>
    %c0_1 = arith.constant 0 : index
    %c0_2 = arith.constant 0 : index
    %2 = vector.load %arg2[%c0_1, %c0_2] : memref<128x128xbf16, #tpu.memory_space<vmem>>, vector<128x128xbf16>
    %cst = arith.constant dense<0.000000e+00> : vector<16x128xf32>
    %3 = tpu.matmul %1, %2, %cst {dimension_numbers = #tpu.dot_dimension_numbers<[1], [0], [0], [1], [0, 0, 1, 1], [], []>} : vector<16x128xbf16>, vector<128x128xbf16>, vector<16x128xf32> -> vector<16x128xf32>
    %c0_3 = arith.constant 0 : index
    %c0_4 = arith.constant 0 : index
    %4 = vector.load %arg3[%c0_3, %c0_4] : memref<1x128xf32, #tpu.memory_space<vmem>>, vector<1x128xf32>
    %5 = vector.broadcast %4 : vector<1x128xf32> to vector<16x128xf32>
    %6 = arith.addf %3, %5 : vector<16x128xf32>
    %cst_5 = arith.constant 0.000000e+00 : f32
    %7 = vector.broadcast %cst_5 : f32 to vector<16x128xf32>
    %8 = arith.maximumf %6, %7 : vector<16x128xf32>
    %9 = arith.truncf %8 : vector<16x128xf32> to vector<16x128xbf16>
    %c0_6 = arith.constant 0 : index
    %c0_7 = arith.constant 0 : index
    %10 = vector.load %arg4[%c0_6, %c0_7] : memref<128x128xbf16, #tpu.memory_space<vmem>>, vector<128x128xbf16>
    %cst_8 = arith.constant dense<0.000000e+00> : vector<16x128xf32>
    %11 = tpu.matmul %9, %10, %cst_8 {dimension_numbers = #tpu.dot_dimension_numbers<[1], [0], [0], [1], [0, 0, 1, 1], [], []>} : vector<16x128xbf16>, vector<128x128xbf16>, vector<16x128xf32> -> vector<16x128xf32>
    %c0_9 = arith.constant 0 : index
    %c0_10 = arith.constant 0 : index
    %12 = vector.load %arg5[%c0_9, %c0_10] : memref<1x128xf32, #tpu.memory_space<vmem>>, vector<1x128xf32>
    %13 = vector.broadcast %12 : vector<1x128xf32> to vector<16x128xf32>
    %14 = arith.addf %11, %13 : vector<16x128xf32>
    %15 = arith.addf %14, %0 : vector<16x128xf32>
    %16 = tpu.iota {dimensions = array<i32: 1>} : vector<1x128xi32>
    %c32_i32 = arith.constant 32 : i32
    %17 = vector.broadcast %c32_i32 : i32 to vector<1x128xi32>
    %18 = arith.cmpi slt, %16, %17 : vector<1x128xi32>
    %cst_11 = arith.constant 0.000000e+00 : f32
    %19 = vector.shape_cast %18 : vector<1x128xi1> to vector<1x128xi1>
    %20 = vector.broadcast %19 : vector<1x128xi1> to vector<16x128xi1>
    %21 = vector.broadcast %cst_11 : f32 to vector<16x128xf32>
    %22 = arith.select %20, %15, %21 : vector<16x128xi1>, vector<16x128xf32>
    %cst_12 = arith.constant dense<0.000000e+00> : vector<16xf32>
    %23 = vector.multi_reduction <add>, %22, %cst_12 [1] : vector<16x128xf32> to vector<16xf32>
    %24 = vector.shape_cast %23 : vector<16xf32> to vector<16x1xf32>
    %cst_13 = arith.constant 3.125000e-02 : f32
    %25 = vector.broadcast %cst_13 : f32 to vector<16x1xf32>
    %26 = arith.mulf %24, %25 : vector<16x1xf32>
    %27 = vector.broadcast %26 : vector<16x1xf32> to vector<16x128xf32>
    %28 = arith.subf %22, %27 : vector<16x128xf32>
    %cst_14 = arith.constant 0.000000e+00 : f32
    %29 = vector.shape_cast %18 : vector<1x128xi1> to vector<1x128xi1>
    %30 = vector.broadcast %29 : vector<1x128xi1> to vector<16x128xi1>
    %31 = vector.broadcast %cst_14 : f32 to vector<16x128xf32>
    %32 = arith.select %30, %28, %31 : vector<16x128xi1>, vector<16x128xf32>
    %33 = arith.mulf %32, %32 : vector<16x128xf32>
    %cst_15 = arith.constant dense<0.000000e+00> : vector<16xf32>
    %34 = vector.multi_reduction <add>, %33, %cst_15 [1] : vector<16x128xf32> to vector<16xf32>
    %35 = vector.shape_cast %34 : vector<16xf32> to vector<16x1xf32>
    %cst_16 = arith.constant 3.125000e-02 : f32
    %36 = vector.broadcast %cst_16 : f32 to vector<16x1xf32>
    %37 = arith.mulf %35, %36 : vector<16x1xf32>
    %cst_17 = arith.constant 9.99999997E-7 : f32
    %38 = vector.broadcast %cst_17 : f32 to vector<16x1xf32>
    %39 = arith.addf %37, %38 : vector<16x1xf32>
    %40 = math.rsqrt %39 : vector<16x1xf32>
    %41 = vector.broadcast %40 : vector<16x1xf32> to vector<16x128xf32>
    %42 = arith.mulf %32, %41 : vector<16x128xf32>
    %c0_18 = arith.constant 0 : index
    %c0_19 = arith.constant 0 : index
    %43 = vector.load %arg6[%c0_18, %c0_19] : memref<1x128xf32, #tpu.memory_space<vmem>>, vector<1x128xf32>
    %44 = vector.broadcast %43 : vector<1x128xf32> to vector<16x128xf32>
    %45 = arith.mulf %42, %44 : vector<16x128xf32>
    %c0_20 = arith.constant 0 : index
    %c0_21 = arith.constant 0 : index
    %46 = vector.load %arg7[%c0_20, %c0_21] : memref<1x128xf32, #tpu.memory_space<vmem>>, vector<1x128xf32>
    %47 = vector.broadcast %46 : vector<1x128xf32> to vector<16x128xf32>
    %48 = arith.addf %45, %47 : vector<16x128xf32>
    %c0_22 = arith.constant 0 : index
    %c0_23 = arith.constant 0 : index
    %49 = vector.load %arg8[%c0_22, %c0_23] : memref<16x128xf32, #tpu.memory_space<vmem>>, vector<16x128xf32>
    tpu.vector_store %arg8[%c0_22, %c0_23], %48 {strides = array<i32>} : memref<16x128xf32, #tpu.memory_space<vmem>>, vector<16x128xf32>,
    return
  }
  func.func @transform_0(%arg0: i32) -> (i32, i32) {
    %c0_i32 = arith.constant 0 : i32
    %c0_i32_0 = arith.constant 0 : i32
    return %arg0, %c0_i32 : i32, i32
  }
  func.func @transform_1(%arg0: i32) -> (i32, i32) {
    %c0_i32 = arith.constant 0 : i32
    %c0_i32_0 = arith.constant 0 : i32
    %c0_i32_1 = arith.constant 0 : i32
    return %c0_i32, %c0_i32_0 : i32, i32
  }
  func.func @transform_2(%arg0: i32) -> (i32, i32) {
    %c0_i32 = arith.constant 0 : i32
    %c0_i32_0 = arith.constant 0 : i32
    %c0_i32_1 = arith.constant 0 : i32
    return %c0_i32, %c0_i32_0 : i32, i32
  }
  func.func @transform_3(%arg0: i32) -> (i32, i32) {
    %c0_i32 = arith.constant 0 : i32
    %c0_i32_0 = arith.constant 0 : i32
    %c0_i32_1 = arith.constant 0 : i32
    return %c0_i32, %c0_i32_0 : i32, i32
  }
  func.func @transform_4(%arg0: i32) -> (i32, i32) {
    %c0_i32 = arith.constant 0 : i32
    %c0_i32_0 = arith.constant 0 : i32
    %c0_i32_1 = arith.constant 0 : i32
    return %c0_i32, %c0_i32_0 : i32, i32
  }
  func.func @transform_5(%arg0: i32) -> (i32, i32) {
    %c0_i32 = arith.constant 0 : i32
    %c0_i32_0 = arith.constant 0 : i32
    %c0_i32_1 = arith.constant 0 : i32
    return %c0_i32, %c0_i32_0 : i32, i32
  }
  func.func @transform_6(%arg0: i32) -> (i32, i32) {
    %c0_i32 = arith.constant 0 : i32
    %c0_i32_0 = arith.constant 0 : i32
    %c0_i32_1 = arith.constant 0 : i32
    return %c0_i32, %c0_i32_0 : i32, i32
  }
  func.func @transform_7(%arg0: i32) -> (i32, i32) {
    %c0_i32 = arith.constant 0 : i32
    %c0_i32_0 = arith.constant 0 : i32
    return %arg0, %c0_i32 : i32, i32
  }
}

</mosaic_0001>

<llo_original>
// kernel: tpu_custom_call.1
$region0: #{tpu_custom_call.1}
  #allocation0 [shape = 'u32[]', space=smem, size = 0x4, offset = 0x4, fixed_abs, tag = 'smem constant byte address 0x4 - core index']
  #allocation1 [shape = 'u32[72,128]{1,0:T(1,128)}', space=vmem, size = 0x9000, scoped, tag = 'internal scratch']
  %s0 = inlined_call_operand.hbm [shape: f32[16,128], index: 0, kind: input, shape index: {}]
  %s1 = inlined_call_operand.hbm [shape: bf16[128,128], index: 1, kind: input, shape index: {}]
  %s2 = inlined_call_operand.vmem [shape: f32[1,128], index: 2, kind: input, shape index: {}]
  %s3 = inlined_call_operand.hbm [shape: bf16[128,128], index: 3, kind: input, shape index: {}]
  %s4 = inlined_call_operand.vmem [shape: f32[1,128], index: 4, kind: input, shape index: {}]
  %s5 = inlined_call_operand.vmem [shape: f32[1,128], index: 5, kind: input, shape index: {}]
  %s6 = inlined_call_operand.vmem [shape: f32[1,128], index: 6, kind: input, shape index: {}]
  %s7 = inlined_call_operand.hbm [shape: f32[16,128], index: 7, kind: output, shape index: {}]
  %s8 = sld [smem:[#allocation0]]
  $region50: #{tpu_custom_call.1} parent=0
    _
  %s10 = ssub.s32 1, %s8
  %s11 = scalar_select 0, %s10, %s8
  $region1: #{tpu_custom_call.1} parent=0
    #allocation2 [shape = 'u8[8192]{0}', space=vmem, size = 0x2000, scoped, tag = 'input window, operand 0, single buffered']
    #allocation3 [shape = 's32[1]{0}', space=sflag, size = 0x4, scoped, tag = 'scoped memory for tpu_custom_call.1']
    #allocation4 [shape = 's32[1]{0}', space=sflag, size = 0x4, scoped, tag = 'scoped memory for tpu_custom_call.1']
    #allocation5 [shape = 'u8[32768]{0}', space=vmem, size = 0x8000, scoped, tag = 'input window, operand 1, single buffered']
    #allocation6 [shape = 's32[1]{0}', space=sflag, size = 0x4, scoped, tag = 'scoped memory for tpu_custom_call.1']
    #allocation7 [shape = 'u8[32768]{0}', space=vmem, size = 0x8000, scoped, tag = 'input window, operand 3, single buffered']
    #allocation8 [shape = 'u8[8192]{0}', space=vmem, size = 0x2000, scoped, tag = 'output window, operand 0, single buffered']
    %12 = vsyncpa [#allocation3], 0
    %13 = vsyncpa [#allocation6], 0
    %14 = vsyncpa [#allocation4], 0
    // Predicated region
    $region2: #{tpu_custom_call.1} parent=1 // pred_check
      _
    $region3: #{tpu_custom_call.1} parent=1 // pred_check_branch
      %16 = sbr.rel (0) target = $region5
    $region4: #{tpu_custom_call.1} parent=1 // pred_region
      %18 = vsyncadd [#allocation3], 0
      %s19 = sshll.u32 %s0, 4
      %s20 = int_to_ptr.hbm [resolvable:$true] %s19
      %s21 = sshll.u32 [#allocation2], 4
      %s22 = int_to_ptr.vmem [resolvable:$true] %s21
      %27 = dma.hbm_to_vmem [thread:$0]  %s20, 256, %s22, [#allocation3], 128, 128, 8
    $region5: #{tpu_custom_call.1} parent=1 // pred_fallthru
      _
    // Predicated region
    $region6: #{tpu_custom_call.1} parent=1 // pred_check
      _
    $region7: #{tpu_custom_call.1} parent=1 // pred_check_branch
      %29 = sbr.rel (0) target = $region9
    $region8: #{tpu_custom_call.1} parent=1 // pred_region
      %31 = vsyncadd [#allocation6], 0
      %s32 = sshll.u32 %s1, 4
      %s33 = int_to_ptr.hbm [resolvable:$true] %s32
      %s34 = sshll.u32 [#allocation5], 4
      %s35 = int_to_ptr.vmem [resolvable:$true] %s34
      %40 = dma.hbm_to_vmem [thread:$0]  %s33, 1024, %s35, [#allocation6], 64, 64, 4
    $region9: #{tpu_custom_call.1} parent=1 // pred_fallthru
      _
    // Predicated region
    $region10: #{tpu_custom_call.1} parent=1 // pred_check
      _
    $region11: #{tpu_custom_call.1} parent=1 // pred_check_branch
      %42 = sbr.rel (0) target = $region13
    $region12: #{tpu_custom_call.1} parent=1 // pred_region
      _
    $region13: #{tpu_custom_call.1} parent=1 // pred_fallthru
      _
    // Predicated region
    $region14: #{tpu_custom_call.1} parent=1 // pred_check
      _
    $region15: #{tpu_custom_call.1} parent=1 // pred_check_branch
      %44 = sbr.rel (0) target = $region17
    $region16: #{tpu_custom_call.1} parent=1 // pred_region
      %46 = vsyncadd [#allocation6], 0
      %s47 = sshll.u32 %s3, 4
      %s48 = int_to_ptr.hbm [resolvable:$true] %s47
      %s49 = sshll.u32 [#allocation7], 4
      %s50 = int_to_ptr.vmem [resolvable:$true] %s49
      %55 = dma.hbm_to_vmem [thread:$0]  %s48, 1024, %s50, [#allocation6], 64, 64, 4
    $region17: #{tpu_custom_call.1} parent=1 // pred_fallthru
      _
    // Predicated region
    $region18: #{tpu_custom_call.1} parent=1 // pred_check
      _
    $region19: #{tpu_custom_call.1} parent=1 // pred_check_branch
      %57 = sbr.rel (0) target = $region21
    $region20: #{tpu_custom_call.1} parent=1 // pred_region
      _
    $region21: #{tpu_custom_call.1} parent=1 // pred_fallthru
      _
    // Predicated region
    $region22: #{tpu_custom_call.1} parent=1 // pred_check
      _
    $region23: #{tpu_custom_call.1} parent=1 // pred_check_branch
      %59 = sbr.rel (0) target = $region25
    $region24: #{tpu_custom_call.1} parent=1 // pred_region
      _
    $region25: #{tpu_custom_call.1} parent=1 // pred_fallthru
      _
    // Predicated region
    $region26: #{tpu_custom_call.1} parent=1 // pred_check
      _
    $region27: #{tpu_custom_call.1} parent=1 // pred_check_branch
      %61 = sbr.rel (0) target = $region29
    $region28: #{tpu_custom_call.1} parent=1 // pred_region
      _
    $region29: #{tpu_custom_call.1} parent=1 // pred_fallthru
      _
    // Predicated region
    $region30: #{tpu_custom_call.1} parent=1 // pred_check
      _
    $region31: #{tpu_custom_call.1} parent=1 // pred_check_branch
      %63 = sbr.rel (0) target = $region33
    $region32: #{tpu_custom_call.1} parent=1 // pred_region
      %65 = dma.done [#allocation3], 256
    $region33: #{tpu_custom_call.1} parent=1 // pred_fallthru
      _
    // Predicated region
    $region34: #{tpu_custom_call.1} parent=1 // pred_check
      _
    $region35: #{tpu_custom_call.1} parent=1 // pred_check_branch
      %67 = sbr.rel (0) target = $region37
    $region36: #{tpu_custom_call.1} parent=1 // pred_region
      %69 = dma.done [#allocation6], 1024
    $region37: #{tpu_custom_call.1} parent=1 // pred_fallthru
      _
    // Predicated region
    $region38: #{tpu_custom_call.1} parent=1 // pred_check
      _
    $region39: #{tpu_custom_call.1} parent=1 // pred_check_branch
      %71 = sbr.rel (0) target = $region41
    $region40: #{tpu_custom_call.1} parent=1 // pred_region
      %73 = dma.done [#allocation6], 1024
    $region41: #{tpu_custom_call.1} parent=1 // pred_fallthru
      _
    %v74 = vld [vmem:[#allocation2] sm:$0xff]
    %v75 = vld [vmem:[#allocation2 + $0x8] sm:$0xff]
    %v76 = vpack.c.bf16 %v75, %v74
    %v77 = vld [vmem:[#allocation5] sm:$0xf]
    %v78 = vld [vmem:[#allocation5 + $0x4] sm:$0xf]
    %v79 = vld [vmem:[#allocation5 + $0x8] sm:$0xf]
    %v80 = vld [vmem:[#allocation5 + $0xc] sm:$0xf]
    %v81 = vld [vmem:[#allocation5 + $0x10] sm:$0xf]
    %v82 = vld [vmem:[#allocation5 + $0x14] sm:$0xf]
    %v83 = vld [vmem:[#allocation5 + $0x18] sm:$0xf]
    %v84 = vld [vmem:[#allocation5 + $0x1c] sm:$0xf]
    %v85 = vld [vmem:[#allocation5 + $0x20] sm:$0xf]
    %v86 = vld [vmem:[#allocation5 + $0x24] sm:$0xf]
    %v87 = vld [vmem:[#allocation5 + $0x28] sm:$0xf]
    %v88 = vld [vmem:[#allocation5 + $0x2c] sm:$0xf]
    %v89 = vld [vmem:[#allocation5 + $0x30] sm:$0xf]
    %v90 = vld [vmem:[#allocation5 + $0x34] sm:$0xf]
    %v91 = vld [vmem:[#allocation5 + $0x38] sm:$0xf]
    %v92 = vld [vmem:[#allocation5 + $0x3c] sm:$0xf]
    %v93 = vld [vmem:[%s2] sm:$0x1]
    %v95 = vperm.slane %v93, 0
    %v113 = vunpack.c.l.b16 %v77
    %v114 = vunpack.c.l.b16 %v78
    %v115 = vunpack.c.l.b16 %v79
    %v116 = vunpack.c.l.b16 %v80
    %v117 = vunpack.c.l.b16 %v81
    %v118 = vunpack.c.l.b16 %v82
    %v119 = vunpack.c.l.b16 %v83
    %v120 = vunpack.c.l.b16 %v84
    %v121 = vunpack.c.l.b16 %v85
    %v122 = vunpack.c.l.b16 %v86
    %v123 = vunpack.c.l.b16 %v87
    %v124 = vunpack.c.l.b16 %v88
    %v125 = vunpack.c.l.b16 %v89
    %v126 = vunpack.c.l.b16 %v90
    %v127 = vunpack.c.l.b16 %v91
    %v128 = vunpack.c.l.b16 %v92
    %v129 = vpack.c.b16 %v114, %v113
    %v130 = vpack.c.b16 %v116, %v115
    %v131 = vpack.c.b16 %v118, %v117
    %v132 = vpack.c.b16 %v120, %v119
    %v133 = vpack.c.b16 %v122, %v121
    %v134 = vpack.c.b16 %v124, %v123
    %v135 = vpack.c.b16 %v126, %v125
    %v136 = vpack.c.b16 %v128, %v127
    %145 = vmatpush.bf16.msra.mxu0 %v136
    %146 = vmatpush.bf16.msra.mxu0 %v135
    %147 = vmatpush.bf16.msra.mxu0 %v134
    %148 = vmatpush.bf16.msra.mxu0 %v133
    %149 = vmatpush.bf16.msra.mxu0 %v132
    %150 = vmatpush.bf16.msra.mxu0 %v131
    %151 = vmatpush.bf16.msra.mxu0 %v130
    %152 = vmatpush.bf16.msra.mxu0 %v129
    %153 = vmatmul.bf16.gmra.mxu0 %v76
    %v154 = vpop.f32.mrf.mxu0
    %v155 = vadd.f32 %v95, %v154
    %v156 = vpop.f32.mrf.mxu0
    %v157 = vadd.f32 %v95, %v156
    %158 = vdwg.mxu0
    %v159 = vmax.f32 %v155, 0.0
    %v160 = vmax.f32 %v157, 0.0
    %v161 = vpack.c.bf16 %v160, %v159
    %v162 = vld [vmem:[#allocation7] sm:$0xf]
    %v163 = vld [vmem:[#allocation7 + $0x4] sm:$0xf]
    %v164 = vld [vmem:[#allocation7 + $0x8] sm:$0xf]
    %v165 = vld [vmem:[#allocation7 + $0xc] sm:$0xf]
    %v166 = vld [vmem:[#allocation7 + $0x10] sm:$0xf]
    %v167 = vld [vmem:[#allocation7 + $0x14] sm:$0xf]
    %v168 = vld [vmem:[#allocation7 + $0x18] sm:$0xf]
    %v169 = vld [vmem:[#allocation7 + $0x1c] sm:$0xf]
    %v170 = vld [vmem:[#allocation7 + $0x20] sm:$0xf]
    %v171 = vld [vmem:[#allocation7 + $0x24] sm:$0xf]
    %v172 = vld [vmem:[#allocation7 + $0x28] sm:$0xf]
    %v173 = vld [vmem:[#allocation7 + $0x2c] sm:$0xf]
    %v174 = vld [vmem:[#allocation7 + $0x30] sm:$0xf]
    %v175 = vld [vmem:[#allocation7 + $0x34] sm:$0xf]
    %v176 = vld [vmem:[#allocation7 + $0x38] sm:$0xf]
    %v177 = vld [vmem:[#allocation7 + $0x3c] sm:$0xf]
    %v178 = vld [vmem:[%s4] sm:$0x1]
    %v180 = vperm.slane %v178, 0
    %v198 = vunpack.c.l.b16 %v162
    %v199 = vunpack.c.l.b16 %v163
    %v200 = vunpack.c.l.b16 %v164
    %v201 = vunpack.c.l.b16 %v165
    %v202 = vunpack.c.l.b16 %v166
    %v203 = vunpack.c.l.b16 %v167
    %v204 = vunpack.c.l.b16 %v168
    %v205 = vunpack.c.l.b16 %v169
    %v206 = vunpack.c.l.b16 %v170
    %v207 = vunpack.c.l.b16 %v171
    %v208 = vunpack.c.l.b16 %v172
    %v209 = vunpack.c.l.b16 %v173
    %v210 = vunpack.c.l.b16 %v174
    %v211 = vunpack.c.l.b16 %v175
    %v212 = vunpack.c.l.b16 %v176
    %v213 = vunpack.c.l.b16 %v177
    %v214 = vpack.c.b16 %v199, %v198
    %v215 = vpack.c.b16 %v201, %v200
    %v216 = vpack.c.b16 %v203, %v202
    %v217 = vpack.c.b16 %v205, %v204
    %v218 = vpack.c.b16 %v207, %v206
    %v219 = vpack.c.b16 %v209, %v208
    %v220 = vpack.c.b16 %v211, %v210
    %v221 = vpack.c.b16 %v213, %v212
    %230 = vmatpush.bf16.msra.mxu0 %v221
    %231 = vmatpush.bf16.msra.mxu0 %v220
    %232 = vmatpush.bf16.msra.mxu0 %v219
    %233 = vmatpush.bf16.msra.mxu0 %v218
    %234 = vmatpush.bf16.msra.mxu0 %v217
    %235 = vmatpush.bf16.msra.mxu0 %v216
    %236 = vmatpush.bf16.msra.mxu0 %v215
    %237 = vmatpush.bf16.msra.mxu0 %v214
    %238 = vmatmul.bf16.gmra.mxu0 %v161
    %v239 = vpop.f32.mrf.mxu0
    %v240 = vadd.f32 %v180, %v239
    %v241 = vpop.f32.mrf.mxu0
    %v242 = vadd.f32 %v180, %v241
    %243 = vdwg.mxu0
    %v244 = vadd.f32 %v240, %v74
    %v245 = vadd.f32 %v242, %v75
    %v246 = vlaneseq
    %v247 = vand.u32 %v246, 127
    %vm248 = vcmp.lt.s32.totalorder %v247, 32
    %v249 = vsel %vm248, 1, 0
    %vm250 = vcmp.eq.s32.totalorder %v249, 1
    %v251 = vsel %vm250, %v244, 0.0
    %v252 = vsel %vm250, %v245, 0.0
    %253 = vadd.xlane.f32.xlu0 %v251
    %v254 = vpop.xlane.xlu0 %253
    %255 = vadd.xlane.f32.xlu0 %v252
    %v256 = vpop.xlane.xlu0 %255
    %v257 = vmul.f32 %v254, 0.03125
    %v258 = vmul.f32 %v256, 0.03125
    %v259 = vsub.f32 %v251, %v257
    %v260 = vsub.f32 %v252, %v258
    %v261 = vsel %vm250, %v259, 0.0
    %v262 = vsel %vm250, %v260, 0.0
    %v263 = vmul.f32 %v261, %v261
    %v264 = vmul.f32 %v262, %v262
    %265 = vadd.xlane.f32.xlu0 %v263
    %v266 = vpop.xlane.xlu0 %265
    %267 = vadd.xlane.f32.xlu0 %v264
    %v268 = vpop.xlane.xlu0 %267
    %v269 = vmul.f32 %v266, 0.03125
    %v270 = vmul.f32 %v268, 0.03125
    %v271 = vadd.f32 %v269, 1e-06
    %v272 = vadd.f32 %v270, 1e-06
    %v273 = vrsqrt.pop %v271
    %v274 = vmul.f32 %v273, %v271
    %v275 = vmul.f32 %v274, %v273
    %v276 = vmul.f32 0.5, %v275
    %v277 = vsub.f32 1.5, %v276
    %v278 = vmul.f32 %v273, %v277
    %vm279 = vweird.f32 %v271
    %vm280 = vweird.f32 %v273
    %vm281 = vmor %vm279, %vm280
    %v282 = vsel %vm281, %v273, %v278
    %v283 = vrsqrt.pop %v272
    %v284 = vmul.f32 %v283, %v272
    %v285 = vmul.f32 %v284, %v283
    %v286 = vmul.f32 0.5, %v285
    %v287 = vsub.f32 1.5, %v286
    %v288 = vmul.f32 %v283, %v287
    %vm289 = vweird.f32 %v272
    %vm290 = vweird.f32 %v283
    %vm291 = vmor %vm289, %vm290
    %v292 = vsel %vm291, %v283, %v288
    %v293 = vmul.f32 %v261, %v282
    %v294 = vmul.f32 %v262, %v292
    %v295 = vld [vmem:[%s5] sm:$0x1]
    %v297 = vperm.slane %v295, 0
    %v299 = vmul.f32 %v293, %v297
    %v300 = vmul.f32 %v294, %v297
    %v301 = vld [vmem:[%s6] sm:$0x1]
    %v303 = vperm.slane %v301, 0
    %v305 = vadd.f32 %v299, %v303
    %v306 = vadd.f32 %v300, %v303
    %307 = vst [vmem:[#allocation8] sm:$0xff] %v305
    %308 = vst [vmem:[#allocation8 + $0x8] sm:$0xff] %v306
    // Predicated region
    $region42: #{tpu_custom_call.1} parent=1 // pred_check
      _
    $region43: #{tpu_custom_call.1} parent=1 // pred_check_branch
      %310 = sbr.rel (0) target = $region45
    $region44: #{tpu_custom_call.1} parent=1 // pred_region
      %312 = vsyncadd [#allocation4], 0
      %s313 = sshll.u32 [#allocation8], 4
      %s314 = int_to_ptr.vmem [resolvable:$true] %s313
      %s315 = sshll.u32 %s7, 4
      %s316 = int_to_ptr.hbm [resolvable:$true] %s315
      %321 = dma.vmem_to_hbm [thread:$0]  %s314, 256, %s316, [#allocation4], 128, 128, 8
    $region45: #{tpu_custom_call.1} parent=1 // pred_fallthru
      _
    // Predicated region
    $region46: #{tpu_custom_call.1} parent=1 // pred_check
      _
    $region47: #{tpu_custom_call.1} parent=1 // pred_check_branch
      %323 = sbr.rel (0) target = $region49
    $region48: #{tpu_custom_call.1} parent=1 // pred_region
      %325 = dma.done [#allocation4], 256
    $region49: #{tpu_custom_call.1} parent=1 // pred_fallthru
      _
    %326 = vsyncpa [#allocation3], 1
    %327 = vsyncpa [#allocation6], 1
    %328 = vsyncpa [#allocation4], 1

// kernel: tpu_custom_call.1
$region0: #{tpu_custom_call.1}
  #allocation0 [shape = 'u32[]', space=smem, size = 0x4, offset = 0x4, fixed_abs, tag = 'smem constant byte address 0x4 - core index']
  #allocation1 [shape = 'u32[72,128]{1,0:T(1,128)}', space=vmem, size = 0x9000, scoped, tag = 'internal scratch']
  %s0 = inlined_call_operand.hbm [shape: f32[16,128], index: 0, kind: input, shape index: {}]
  %s1 = inlined_call_operand.hbm [shape: bf16[128,128], index: 1, kind: input, shape index: {}]
  %s2 = inlined_call_operand.vmem [shape: f32[1,128], index: 2, kind: input, shape index: {}]
  %s3 = inlined_call_operand.hbm [shape: bf16[128,128], index: 3, kind: input, shape index: {}]
  %s4 = inlined_call_operand.vmem [shape: f32[1,128], index: 4, kind: input, shape index: {}]
  %s5 = inlined_call_operand.vmem [shape: f32[1,128], index: 5, kind: input, shape index: {}]
  %s6 = inlined_call_operand.vmem [shape: f32[1,128], index: 6, kind: input, shape index: {}]
  %s7 = inlined_call_operand.hbm [shape: f32[16,128], index: 7, kind: output, shape index: {}]
  %s8 = sld [smem:[#allocation0]]
  $region50: #{tpu_custom_call.1} parent=0
    _
  %s10 = ssub.s32 1, %s8
  %s11 = scalar_select 0, %s10, %s8
  $region1: #{tpu_custom_call.1} parent=0
    #allocation2 [shape = 'u8[8192]{0}', space=vmem, size = 0x2000, scoped, tag = 'input window, operand 0, single buffered']
    #allocation3 [shape = 's32[1]{0}', space=sflag, size = 0x4, scoped, tag = 'scoped memory for tpu_custom_call.1']
    #allocation4 [shape = 's32[1]{0}', space=sflag, size = 0x4, scoped, tag = 'scoped memory for tpu_custom_call.1']
    #allocation5 [shape = 'u8[32768]{0}', space=vmem, size = 0x8000, scoped, tag = 'input window, operand 1, single buffered']
    #allocation6 [shape = 's32[1]{0}', space=sflag, size = 0x4, scoped, tag = 'scoped memory for tpu_custom_call.1']
    #allocation7 [shape = 'u8[32768]{0}', space=vmem, size = 0x8000, scoped, tag = 'input window, operand 3, single buffered']
    #allocation8 [shape = 'u8[8192]{0}', space=vmem, size = 0x2000, scoped, tag = 'output window, operand 0, single buffered']
    %12 = vsyncpa [#allocation3], 0
    %13 = vsyncpa [#allocation6], 0
    %14 = vsyncpa [#allocation4], 0
    // Predicated region
    $region2: #{tpu_custom_call.1} parent=1 // pred_check
      _
    $region3: #{tpu_custom_call.1} parent=1 // pred_check_branch
      %16 = sbr.rel (0) target = $region5
    $region4: #{tpu_custom_call.1} parent=1 // pred_region
      %18 = vsyncadd [#allocation3], 0
      %s19 = sshll.u32 %s0, 4
      %s20 = int_to_ptr.hbm [resolvable:$true] %s19
      %s21 = sshll.u32 [#allocation2], 4
      %s22 = int_to_ptr.vmem [resolvable:$true] %s21
      %27 = dma.hbm_to_vmem [thread:$0]  %s20, 256, %s22, [#allocation3], 128, 128, 8
    $region5: #{tpu_custom_call.1} parent=1 // pred_fallthru
      _
    // Predicated region
    $region6: #{tpu_custom_call.1} parent=1 // pred_check
      _
    $region7: #{tpu_custom_call.1} parent=1 // pred_check_branch
      %29 = sbr.rel (0) target = $region9
    $region8: #{tpu_custom_call.1} parent=1 // pred_region
      %31 = vsyncadd [#allocation6], 0
      %s32 = sshll.u32 %s1, 4
      %s33 = int_to_ptr.hbm [resolvable:$true] %s32
      %s34 = sshll.u32 [#allocation5], 4
      %s35 = int_to_ptr.vmem [resolvable:$true] %s34
      %40 = dma.hbm_to_vmem [thread:$0]  %s33, 1024, %s35, [#allocation6], 64, 64, 4
    $region9: #{tpu_custom_call.1} parent=1 // pred_fallthru
      _
    // Predicated region
    $region10: #{tpu_custom_call.1} parent=1 // pred_check
      _
    $region11: #{tpu_custom_call.1} parent=1 // pred_check_branch
      %42 = sbr.rel (0) target = $region13
    $region12: #{tpu_custom_call.1} parent=1 // pred_region
      _
    $region13: #{tpu_custom_call.1} parent=1 // pred_fallthru
      _
    // Predicated region
    $region14: #{tpu_custom_call.1} parent=1 // pred_check
      _
    $region15: #{tpu_custom_call.1} parent=1 // pred_check_branch
      %44 = sbr.rel (0) target = $region17
    $region16: #{tpu_custom_call.1} parent=1 // pred_region
      %46 = vsyncadd [#allocation6], 0
      %s47 = sshll.u32 %s3, 4
      %s48 = int_to_ptr.hbm [resolvable:$true] %s47
      %s49 = sshll.u32 [#allocation7], 4
      %s50 = int_to_ptr.vmem [resolvable:$true] %s49
      %55 = dma.hbm_to_vmem [thread:$0]  %s48, 1024, %s50, [#allocation6], 64, 64, 4
    $region17: #{tpu_custom_call.1} parent=1 // pred_fallthru
      _
    // Predicated region
    $region18: #{tpu_custom_call.1} parent=1 // pred_check
      _
    $region19: #{tpu_custom_call.1} parent=1 // pred_check_branch
      %57 = sbr.rel (0) target = $region21
    $region20: #{tpu_custom_call.1} parent=1 // pred_region
      _
    $region21: #{tpu_custom_call.1} parent=1 // pred_fallthru
      _
    // Predicated region
    $region22: #{tpu_custom_call.1} parent=1 // pred_check
      _
    $region23: #{tpu_custom_call.1} parent=1 // pred_check_branch
      %59 = sbr.rel (0) target = $region25
    $region24: #{tpu_custom_call.1} parent=1 // pred_region
      _
    $region25: #{tpu_custom_call.1} parent=1 // pred_fallthru
      _
    // Predicated region
    $region26: #{tpu_custom_call.1} parent=1 // pred_check
      _
    $region27: #{tpu_custom_call.1} parent=1 // pred_check_branch
      %61 = sbr.rel (0) target = $region29
    $region28: #{tpu_custom_call.1} parent=1 // pred_region
      _
    $region29: #{tpu_custom_call.1} parent=1 // pred_fallthru
      _
    // Predicated region
    $region30: #{tpu_custom_call.1} parent=1 // pred_check
      _
    $region31: #{tpu_custom_call.1} parent=1 // pred_check_branch
      %63 = sbr.rel (0) target = $region33
    $region32: #{tpu_custom_call.1} parent=1 // pred_region
      %65 = dma.done [#allocation3], 256
    $region33: #{tpu_custom_call.1} parent=1 // pred_fallthru
      _
    // Predicated region
    $region34: #{tpu_custom_call.1} parent=1 // pred_check
      _
    $region35: #{tpu_custom_call.1} parent=1 // pred_check_branch
      %67 = sbr.rel (0) target = $region37
    $region36: #{tpu_custom_call.1} parent=1 // pred_region
      %69 = dma.done [#allocation6], 1024
    $region37: #{tpu_custom_call.1} parent=1 // pred_fallthru
      _
    // Predicated region
    $region38: #{tpu_custom_call.1} parent=1 // pred_check
      _
    $region39: #{tpu_custom_call.1} parent=1 // pred_check_branch
      %71 = sbr.rel (0) target = $region41
    $region40: #{tpu_custom_call.1} parent=1 // pred_region
      %73 = dma.done [#allocation6], 1024
    $region41: #{tpu_custom_call.1} parent=1 // pred_fallthru
      _
    %v74 = vld [vmem:[#allocation2] sm:$0xff]
    %v75 = vld [vmem:[#allocation2 + $0x8] sm:$0xff]
    %v76 = vpack.c.bf16 %v75, %v74
    %v77 = vld [vmem:[#allocation5] sm:$0xf]
    %v78 = vld [vmem:[#allocation5 + $0x4] sm:$0xf]
    %v79 = vld [vmem:[#allocation5 + $0x8] sm:$0xf]
    %v80 = vld [vmem:[#allocation5 + $0xc] sm:$0xf]
    %v81 = vld [vmem:[#allocation5 + $0x10] sm:$0xf]
    %v82 = vld [vmem:[#allocation5 + $0x14] sm:$0xf]
    %v83 = vld [vmem:[#allocation5 + $0x18] sm:$0xf]
    %v84 = vld [vmem:[#allocation5 + $0x1c] sm:$0xf]
    %v85 = vld [vmem:[#allocation5 + $0x20] sm:$0xf]
    %v86 = vld [vmem:[#allocation5 + $0x24] sm:$0xf]
    %v87 = vld [vmem:[#allocation5 + $0x28] sm:$0xf]
    %v88 = vld [vmem:[#allocation5 + $0x2c] sm:$0xf]
    %v89 = vld [vmem:[#allocation5 + $0x30] sm:$0xf]
    %v90 = vld [vmem:[#allocation5 + $0x34] sm:$0xf]
    %v91 = vld [vmem:[#allocation5 + $0x38] sm:$0xf]
    %v92 = vld [vmem:[#allocation5 + $0x3c] sm:$0xf]
    %v93 = vld [vmem:[%s2] sm:$0x1]
    %v95 = vperm.slane %v93, 0
    %v113 = vunpack.c.l.b16 %v77
    %v114 = vunpack.c.l.b16 %v78
    %v115 = vunpack.c.l.b16 %v79
    %v116 = vunpack.c.l.b16 %v80
    %v117 = vunpack.c.l.b16 %v81
    %v118 = vunpack.c.l.b16 %v82
    %v119 = vunpack.c.l.b16 %v83
    %v120 = vunpack.c.l.b16 %v84
    %v121 = vunpack.c.l.b16 %v85
    %v122 = vunpack.c.l.b16 %v86
    %v123 = vunpack.c.l.b16 %v87
    %v124 = vunpack.c.l.b16 %v88
    %v125 = vunpack.c.l.b16 %v89
    %v126 = vunpack.c.l.b16 %v90
    %v127 = vunpack.c.l.b16 %v91
    %v128 = vunpack.c.l.b16 %v92
    %v129 = vpack.c.b16 %v114, %v113
    %v130 = vpack.c.b16 %v116, %v115
    %v131 = vpack.c.b16 %v118, %v117
    %v132 = vpack.c.b16 %v120, %v119
    %v133 = vpack.c.b16 %v122, %v121
    %v134 = vpack.c.b16 %v124, %v123
    %v135 = vpack.c.b16 %v126, %v125
    %v136 = vpack.c.b16 %v128, %v127
    %145 = vmatpush.bf16.msra.mxu0 %v136
    %146 = vmatpush.bf16.msra.mxu0 %v135
    %147 = vmatpush.bf16.msra.mxu0 %v134
    %148 = vmatpush.bf16.msra.mxu0 %v133
    %149 = vmatpush.bf16.msra.mxu0 %v132
    %150 = vmatpush.bf16.msra.mxu0 %v131
    %151 = vmatpush.bf16.msra.mxu0 %v130
    %152 = vmatpush.bf16.msra.mxu0 %v129
    %153 = vmatmul.bf16.gmra.mxu0 %v76
    %v154 = vpop.f32.mrf.mxu0
    %v155 = vadd.f32 %v95, %v154
    %v156 = vpop.f32.mrf.mxu0
    %v157 = vadd.f32 %v95, %v156
    %158 = vdwg.mxu0
    %v159 = vmax.f32 %v155, 0.0
    %v160 = vmax.f32 %v157, 0.0
    %v161 = vpack.c.bf16 %v160, %v159
    %v162 = vld [vmem:[#allocation7] sm:$0xf]
    %v163 = vld [vmem:[#allocation7 + $0x4] sm:$0xf]
    %v164 = vld [vmem:[#allocation7 + $0x8] sm:$0xf]
    %v165 = vld [vmem:[#allocation7 + $0xc] sm:$0xf]
    %v166 = vld [vmem:[#allocation7 + $0x10] sm:$0xf]
    %v167 = vld [vmem:[#allocation7 + $0x14] sm:$0xf]
    %v168 = vld [vmem:[#allocation7 + $0x18] sm:$0xf]
    %v169 = vld [vmem:[#allocation7 + $0x1c] sm:$0xf]
    %v170 = vld [vmem:[#allocation7 + $0x20] sm:$0xf]
    %v171 = vld [vmem:[#allocation7 + $0x24] sm:$0xf]
    %v172 = vld [vmem:[#allocation7 + $0x28] sm:$0xf]
    %v173 = vld [vmem:[#allocation7 + $0x2c] sm:$0xf]
    %v174 = vld [vmem:[#allocation7 + $0x30] sm:$0xf]
    %v175 = vld [vmem:[#allocation7 + $0x34] sm:$0xf]
    %v176 = vld [vmem:[#allocation7 + $0x38] sm:$0xf]
    %v177 = vld [vmem:[#allocation7 + $0x3c] sm:$0xf]
    %v178 = vld [vmem:[%s4] sm:$0x1]
    %v180 = vperm.slane %v178, 0
    %v198 = vunpack.c.l.b16 %v162
    %v199 = vunpack.c.l.b16 %v163
    %v200 = vunpack.c.l.b16 %v164
    %v201 = vunpack.c.l.b16 %v165
    %v202 = vunpack.c.l.b16 %v166
    %v203 = vunpack.c.l.b16 %v167
    %v204 = vunpack.c.l.b16 %v168
    %v205 = vunpack.c.l.b16 %v169
    %v206 = vunpack.c.l.b16 %v170
    %v207 = vunpack.c.l.b16 %v171
    %v208 = vunpack.c.l.b16 %v172
    %v209 = vunpack.c.l.b16 %v173
    %v210 = vunpack.c.l.b16 %v174
    %v211 = vunpack.c.l.b16 %v175
    %v212 = vunpack.c.l.b16 %v176
    %v213 = vunpack.c.l.b16 %v177
    %v214 = vpack.c.b16 %v199, %v198
    %v215 = vpack.c.b16 %v201, %v200
    %v216 = vpack.c.b16 %v203, %v202
    %v217 = vpack.c.b16 %v205, %v204
    %v218 = vpack.c.b16 %v207, %v206
    %v219 = vpack.c.b16 %v209, %v208
    %v220 = vpack.c.b16 %v211, %v210
    %v221 = vpack.c.b16 %v213, %v212
    %230 = vmatpush.bf16.msra.mxu0 %v221
    %231 = vmatpush.bf16.msra.mxu0 %v220
    %232 = vmatpush.bf16.msra.mxu0 %v219
    %233 = vmatpush.bf16.msra.mxu0 %v218
    %234 = vmatpush.bf16.msra.mxu0 %v217
    %235 = vmatpush.bf16.msra.mxu0 %v216
    %236 = vmatpush.bf16.msra.mxu0 %v215
    %237 = vmatpush.bf16.msra.mxu0 %v214
    %238 = vmatmul.bf16.gmra.mxu0 %v161
    %v239 = vpop.f32.mrf.mxu0
    %v240 = vadd.f32 %v180, %v239
    %v241 = vpop.f32.mrf.mxu0
    %v242 = vadd.f32 %v180, %v241
    %243 = vdwg.mxu0
    %v244 = vadd.f32 %v240, %v74
    %v245 = vadd.f32 %v242, %v75
    %v246 = vlaneseq
    %v247 = vand.u32 %v246, 127
    %vm248 = vcmp.lt.s32.totalorder %v247, 32
    %v249 = vsel %vm248, 1, 0
    %vm250 = vcmp.eq.s32.totalorder %v249, 1
    %v251 = vsel %vm250, %v244, 0.0
    %v252 = vsel %vm250, %v245, 0.0
    %253 = vadd.xlane.f32.xlu0 %v251
    %v254 = vpop.xlane.xlu0 %253
    %255 = vadd.xlane.f32.xlu0 %v252
    %v256 = vpop.xlane.xlu0 %255
    %v257 = vmul.f32 %v254, 0.03125
    %v258 = vmul.f32 %v256, 0.03125
    %v259 = vsub.f32 %v251, %v257
    %v260 = vsub.f32 %v252, %v258
    %v261 = vsel %vm250, %v259, 0.0
    %v262 = vsel %vm250, %v260, 0.0
    %v263 = vmul.f32 %v261, %v261
    %v264 = vmul.f32 %v262, %v262
    %265 = vadd.xlane.f32.xlu0 %v263
    %v266 = vpop.xlane.xlu0 %265
    %267 = vadd.xlane.f32.xlu0 %v264
    %v268 = vpop.xlane.xlu0 %267
    %v269 = vmul.f32 %v266, 0.03125
    %v270 = vmul.f32 %v268, 0.03125
    %v271 = vadd.f32 %v269, 1e-06
    %v272 = vadd.f32 %v270, 1e-06
    %v273 = vrsqrt.pop %v271
    %v274 = vmul.f32 %v273, %v271
    %v275 = vmul.f32 %v274, %v273
    %v276 = vmul.f32 0.5, %v275
    %v277 = vsub.f32 1.5, %v276
    %v278 = vmul.f32 %v273, %v277
    %vm279 = vweird.f32 %v271
    %vm280 = vweird.f32 %v273
    %vm281 = vmor %vm279, %vm280
    %v282 = vsel %vm281, %v273, %v278
    %v283 = vrsqrt.pop %v272
    %v284 = vmul.f32 %v283, %v272
    %v285 = vmul.f32 %v284, %v283
    %v286 = vmul.f32 0.5, %v285
    %v287 = vsub.f32 1.5, %v286
    %v288 = vmul.f32 %v283, %v287
    %vm289 = vweird.f32 %v272
    %vm290 = vweird.f32 %v283
    %vm291 = vmor %vm289, %vm290
    %v292 = vsel %vm291, %v283, %v288
    %v293 = vmul.f32 %v261, %v282
    %v294 = vmul.f32 %v262, %v292
    %v295 = vld [vmem:[%s5] sm:$0x1]
    %v297 = vperm.slane %v295, 0
    %v299 = vmul.f32 %v293, %v297
    %v300 = vmul.f32 %v294, %v297
    %v301 = vld [vmem:[%s6] sm:$0x1]
    %v303 = vperm.slane %v301, 0
    %v305 = vadd.f32 %v299, %v303
    %v306 = vadd.f32 %v300, %v303
    %307 = vst [vmem:[#allocation8] sm:$0xff] %v305
    %308 = vst [vmem:[#allocation8 + $0x8] sm:$0xff] %v306
    // Predicated region
    $region42: #{tpu_custom_call.1} parent=1 // pred_check
      _
    $region43: #{tpu_custom_call.1} parent=1 // pred_check_branch
      %310 = sbr.rel (0) target = $region45
    $region44: #{tpu_custom_call.1} parent=1 // pred_region
      %312 = vsyncadd [#allocation4], 0
      %s313 = sshll.u32 [#allocation8], 4
      %s314 = int_to_ptr.vmem [resolvable:$true] %s313
      %s315 = sshll.u32 %s7, 4
      %s316 = int_to_ptr.hbm [resolvable:$true] %s315
      %321 = dma.vmem_to_hbm [thread:$0]  %s314, 256, %s316, [#allocation4], 128, 128, 8
    $region45: #{tpu_custom_call.1} parent=1 // pred_fallthru
      _
    // Predicated region
    $region46: #{tpu_custom_call.1} parent=1 // pred_check
      _
    $region47: #{tpu_custom_call.1} parent=1 // pred_check_branch
      %323 = sbr.rel (0) target = $region49
    $region48: #{tpu_custom_call.1} parent=1 // pred_region
      %325 = dma.done [#allocation4], 256
    $region49: #{tpu_custom_call.1} parent=1 // pred_fallthru
      _
    %326 = vsyncpa [#allocation3], 1
    %327 = vsyncpa [#allocation6], 1
    %328 = vsyncpa [#allocation4], 1

</llo_original>
